<compile_context>
chip_gen: v7x
topology: tpu7x:2x2x1
jax: 0.10.0
libtpu: 0.0.40
codegen_flags: <defaults>
</compile_context>

<pallas_src>
import functools

import jax
import jax.numpy as jnp
from jax.experimental import pallas as pl
from jax.experimental.pallas import tpu as pltpu

LANE = 128                      # TPU vreg lane width
_VMEM_BUDGET = 40 * 1024 * 1024  # tile budget: fits v7x's 64 MiB/TC with headroom


def _round_up(x, m):
    return (x + m - 1) // m * m


# ------------------------------ GELU (erf form) ----------------------------- #

def _erf(x):
    """Abramowitz & Stegun 7.1.26 erf approximation (|err| < 1.5e-7).

    Built from exp / reciprocal / mul / add / where only: exp + reciprocal go to
    the EUP slot, the polynomial to the VPU -> guaranteed Mosaic lowering.
    """
    a1, a2, a3, a4, a5 = (0.254829592, -0.284496736, 1.421413741,
                          -1.453152027, 1.061405429)
    p = 0.3275911
    ax = jnp.abs(x)
    # EUP reciprocal instead of a long VPU divide sequence.
    t = pl.reciprocal(1.0 + p * ax, approx=True)
    poly = ((((a5 * t + a4) * t + a3) * t + a2) * t + a1) * t
    y = 1.0 - poly * jnp.exp(-ax * ax)
    return jnp.where(x < 0.0, -y, y)


def _gelu_exact(x):
    # Matches torch.nn.GELU() default (erf formulation, not the tanh approx).
    return 0.5 * x * (1.0 + _erf(x * 0.7071067811865476))


# ------------------------------ Pallas kernel ------------------------------- #

def _mlp_kernel(x_ref, w1_ref, b1_ref, w2_ref, b2_ref, o_ref, acc_ref):
    j = pl.program_id(1)                      # hidden-dim tile index (reduction)

    @pl.when(j == 0)
    def _():
        acc_ref[...] = jnp.zeros_like(acc_ref)

    # fc1 for this H-tile: bf16 MXU matmul, f32 accumulation. The x cast is
    # per-tile VPU work hidden under the MXU (x stays f32 in HBM).
    x_bf16 = x_ref[...].astype(jnp.bfloat16)
    h = jnp.dot(x_bf16, w1_ref[...], preferred_element_type=jnp.float32)
    h = h + b1_ref[...]
    h = _gelu_exact(h)
    # Dropout(p=0.0) is identity.

    # fc2 partial product for this H-tile, accumulated in f32 VMEM scratch.
    acc_ref[...] += jnp.dot(h.astype(jnp.bfloat16), w2_ref[...],
                            preferred_element_type=jnp.float32)

    @pl.when(j == pl.num_programs(1) - 1)
    def _():
        o_ref[...] = (acc_ref[...] + b2_ref[...]).astype(o_ref.dtype)


# ------------------------------ tiling helpers ------------------------------ #

def _vmem_bytes(tm, Kp, Np, th, nbuf_w):
    x_b = 2 * tm * Kp * 4                 # f32 input tile, double-buffered
    w1_b = nbuf_w * Kp * th * 2           # bf16 fc1 weight tile
    w2_b = nbuf_w * th * Np * 2           # bf16 fc2 weight tile
    bias_b = nbuf_w * (th + Np) * 4 * 8   # biases incl. sublane padding headroom
    out_b = 2 * tm * Np * 4               # f32 output tile, double-buffered
    acc_b = tm * Np * 4                   # f32 accumulator scratch
    h_b = 2 * tm * th * 4                 # GELU intermediate / temp headroom
    return x_b + w1_b + w2_b + bias_b + out_b + acc_b + h_b


def _choose_tm(M, Kp, Np, th, nbuf_w):
    m16 = _round_up(M, 16)                # multiple of 16 for bf16 sublane packing
    for cand in (512, 256, 128, 64, 32, 16):
        tm = min(cand, m16)
        if _vmem_bytes(tm, Kp, Np, th, nbuf_w) <= _VMEM_BUDGET:
            return tm
    return 16


# ------------------------- one-time parameter prep -------------------------- #

def prepare_params(params, *, th_target=512):
    """Pad + bf16-cast the weights ONCE (hoisted off the per-call hot path)."""
    w1, b1, w2, b2 = params["w1"], params["b1"], params["w2"], params["b2"]
    D, H = w1.shape
    Do = w2.shape[1]

    Kp = _round_up(D, LANE)
    Np = _round_up(Do, LANE)
    Hp = _round_up(H, LANE)
    if Hp <= th_target:
        th = Hp                           # single H-tile: weights stay resident
    else:
        th = th_target                    # multiple of 256 -> full-width MXU slabs
        Hp = _round_up(Hp, th)

    prepped = dict(
        w1=jnp.pad(w1, ((0, Kp - D), (0, Hp - H))).astype(jnp.bfloat16),
        w2=jnp.pad(w2, ((0, Hp - H), (0, Np - Do))).astype(jnp.bfloat16),
        b1=jnp.pad(b1, (0, Hp - H)).reshape(1, Hp).astype(jnp.float32),
        b2=jnp.pad(b2, (0, Np - Do)).reshape(1, Np).astype(jnp.float32),
    )
    meta = dict(D=D, H=H, Do=Do, Kp=Kp, Hp=Hp, Np=Np, th=th)
    return prepped, meta


# --------------------------------- forward ---------------------------------- #

def mlp_forward(x, prepped, *, meta):
    """x: [B, S, D_in] f32 -> [B, S, D_out] f32, fused Pallas MLP."""
    B, S, D = x.shape
    D0, Do = meta["D"], meta["Do"]
    Kp, Hp, Np, th = meta["Kp"], meta["Hp"], meta["Np"], meta["th"]
    assert D == D0, "input feature dim does not match prepared params"

    M = B * S
    gh = Hp // th
    nbuf_w = 1 if gh == 1 else 2          # constant-index specs -> single buffer
    tm = _choose_tm(M, Kp, Np, th, nbuf_w)
    Mp = _round_up(M, tm)
    gm = Mp // tm

    # x stays f32; only pad when the shapes demand it (no extra XLA pass otherwise).
    x2d = x.reshape(M, D)
    if Mp != M or Kp != D:
        x2d = jnp.pad(x2d, ((0, Mp - M), (0, Kp - D)))

    # Single-buffer the blocks whose index never changes over the whole grid.
    def _w_spec(shape, index_map):
        if gh == 1:
            return pl.BlockSpec(shape, index_map, pipeline_mode=pl.Buffered(1))
        return pl.BlockSpec(shape, index_map)

    est = _vmem_bytes(tm, Kp, Np, th, nbuf_w)
    vmem_limit = min(max(int(est * 1.25) + (2 << 20), 32 << 20), 56 << 20)

    cost = pl.CostEstimate(
        flops=2 * Mp * (Kp * Hp + Hp * Np),
        transcendentals=2 * Mp * Hp,              # exp + reciprocal per hidden elem
        bytes_accessed=(Mp * Kp * 4 + Kp * Hp * 2 + Hp * Np * 2
                        + Hp * 4 + Np * 4 + Mp * Np * 4),
    )

    out = pl.pallas_call(
        _mlp_kernel,
        out_shape=jax.ShapeDtypeStruct((Mp, Np), jnp.float32),
        grid_spec=pltpu.PrefetchScalarGridSpec(
            num_scalar_prefetch=0,
            grid=(gm, gh),
            in_specs=[
                pl.BlockSpec((tm, Kp), lambda i, j: (i, 0)),    # x rows: streamed
                _w_spec((Kp, th), lambda i, j: (0, j)),         # fc1 weight tile
                _w_spec((1, th), lambda i, j: (0, j)),          # fc1 bias tile
                _w_spec((th, Np), lambda i, j: (j, 0)),         # fc2 weight tile
                pl.BlockSpec((1, Np), lambda i, j: (0, 0),      # fc2 bias: constant
                             pipeline_mode=pl.Buffered(1)),
            ],
            out_specs=pl.BlockSpec((tm, Np), lambda i, j: (i, 0)),
            scratch_shapes=[pltpu.VMEM((tm, Np), jnp.float32)],
        ),
        compiler_params=pltpu.CompilerParams(
            dimension_semantics=("parallel", "arbitrary"),
            vmem_limit_bytes=vmem_limit),
        cost_estimate=cost,
    )(x2d, prepped["w1"], prepped["b1"], prepped["w2"], prepped["b2"])

    if Mp == M and Np == Do:
        return out.reshape(B, S, Do)
    return out[:M, :Do].reshape(B, S, Do)


# ---------------------------- pure-JAX reference ----------------------------- #

def ref_forward(x, params):
    h = x @ params["w1"] + params["b1"]
    h = jax.nn.gelu(h, approximate=False)   # torch.nn.GELU() default (erf)
    y = h @ params["w2"] + params["b2"]
    return y                                # Dropout(p=0.0) is identity


# ----------------------------------- main ------------------------------------ #

if __name__ == "__main__":
    key = jax.random.PRNGKey(0)
    kx, k1, k2, k3, k4 = jax.random.split(key, 5)

    B, S, D_IN, D_HID, D_OUT = 2, 8, 32, 64, 32
    x = jax.random.normal(kx, (B, S, D_IN), jnp.float32)
    params = dict(
        w1=jax.random.normal(k1, (D_IN, D_HID), jnp.float32) / jnp.sqrt(D_IN),
        b1=jax.random.normal(k2, (D_HID,), jnp.float32) * 0.1,
        w2=jax.random.normal(k3, (D_HID, D_OUT), jnp.float32) / jnp.sqrt(D_HID),
        b2=jax.random.normal(k4, (D_OUT,), jnp.float32) * 0.1,
    )

    # One-time parameter prep (padding + bf16 cast), off the per-call hot path.
    prepped, meta = prepare_params(params)
    fwd = jax.jit(functools.partial(mlp_forward, meta=meta))

    out = jax.block_until_ready(fwd(x, prepped))
    ref = ref_forward(x, params)

    assert out.shape == ref.shape == (B, S, D_OUT)
    max_err = float(jnp.max(jnp.abs(out - ref)))
    if max_err > 5e-2:   # bf16 matmul inputs vs f32 reference
        raise SystemExit(f"mismatch vs reference: max_err={max_err}")
    print("KERNEL_OK")
</pallas_src>

<mosaic_0001>
module attributes {stable_mosaic.version = 11 : i64} {
  func.func @_mlp_kernel(%arg0: i32, %arg1: i32, %arg2: memref<16x128xf32, #tpu.memory_space<vmem>>, %arg3: memref<128x128xbf16, #tpu.memory_space<vmem>>, %arg4: memref<1x128xf32, #tpu.memory_space<vmem>>, %arg5: memref<128x128xbf16, #tpu.memory_space<vmem>>, %arg6: memref<1x128xf32, #tpu.memory_space<vmem>>, %arg7: memref<16x128xf32, #tpu.memory_space<vmem>>, %arg8: memref<16x128xf32, #tpu.memory_space<vmem>>) attributes {dimension_semantics = [#tpu.dimension_semantics<parallel>, #tpu.dimension_semantics<arbitrary>], iteration_bounds = array<i64: 1, 1>, scalar_prefetch = 0 : i64, scratch_operands = 1 : i64, tpu.core_type = #tpu.core_type<tc>, window_params = [{transform_indices = @transform_0, window_bounds = array<i64: 16, 128>}, {pipeline_mode = #tpu.pipeline_mode<synchronous>, transform_indices = @transform_1, window_bounds = array<i64: 128, 128>}, {pipeline_mode = #tpu.pipeline_mode<synchronous>, transform_indices = @transform_2, window_bounds = array<i64: 1, 128>}, {pipeline_mode = #tpu.pipeline_mode<synchronous>, transform_indices = @transform_3, window_bounds = array<i64: 128, 128>}, {pipeline_mode = #tpu.pipeline_mode<synchronous>, transform_indices = @transform_4, window_bounds = array<i64: 1, 128>}, {transform_indices = @transform_5, window_bounds = array<i64: 16, 128>}]} {
    %c0_i32 = arith.constant 0 : i32
    %0 = arith.cmpi eq, %arg1, %c0_i32 : i32
    %1 = arith.extui %0 : i1 to i32
    %c0_i32_0 = arith.constant 0 : i32
    %2 = arith.cmpi ne, %1, %c0_i32_0 : i32
    scf.if %2 {
      %cst_29 = arith.constant 0.000000e+00 : f32
      %58 = vector.broadcast %cst_29 : f32 to vector<16x128xf32>
      %c0_30 = arith.constant 0 : index
      %c0_31 = arith.constant 0 : index
      %59 = vector.load %arg8[%c0_30, %c0_31] : memref<16x128xf32, #tpu.memory_space<vmem>>, vector<16x128xf32>
      tpu.vector_store %arg8[%c0_30, %c0_31], %58 {strides = array<i32>} : memref<16x128xf32, #tpu.memory_space<vmem>>, vector<16x128xf32>,
    } else {
    }
    %c0 = arith.constant 0 : index
    %c0_1 = arith.constant 0 : index
    %3 = vector.load %arg2[%c0, %c0_1] : memref<16x128xf32, #tpu.memory_space<vmem>>, vector<16x128xf32>
    %4 = arith.truncf %3 : vector<16x128xf32> to vector<16x128xbf16>
    %c0_2 = arith.constant 0 : index
    %c0_3 = arith.constant 0 : index
    %5 = vector.load %arg3[%c0_2, %c0_3] : memref<128x128xbf16, #tpu.memory_space<vmem>>, vector<128x128xbf16>
    %cst = arith.constant dense<0.000000e+00> : vector<16x128xf32>
    %6 = tpu.matmul %4, %5, %cst {dimension_numbers = #tpu.dot_dimension_numbers<[1], [0], [0], [1], [0, 0, 1, 1], [], []>} : vector<16x128xbf16>, vector<128x128xbf16>, vector<16x128xf32> -> vector<16x128xf32>
    %c0_4 = arith.constant 0 : index
    %c0_5 = arith.constant 0 : index
    %7 = vector.load %arg4[%c0_4, %c0_5] : memref<1x128xf32, #tpu.memory_space<vmem>>, vector<1x128xf32>
    %8 = vector.broadcast %7 : vector<1x128xf32> to vector<16x128xf32>
    %9 = arith.addf %6, %8 : vector<16x128xf32>
    %cst_6 = arith.constant 5.000000e-01 : f32
    %10 = vector.broadcast %cst_6 : f32 to vector<16x128xf32>
    %11 = arith.mulf %10, %9 : vector<16x128xf32>
    %cst_7 = arith.constant 0.707106769 : f32
    %12 = vector.broadcast %cst_7 : f32 to vector<16x128xf32>
    %13 = arith.mulf %9, %12 : vector<16x128xf32>
    %14 = math.absf %13 : vector<16x128xf32>
    %cst_8 = arith.constant 0.327591091 : f32
    %15 = vector.broadcast %cst_8 : f32 to vector<16x128xf32>
    %16 = arith.mulf %15, %14 : vector<16x128xf32>
    %cst_9 = arith.constant 1.000000e+00 : f32
    %17 = vector.broadcast %cst_9 : f32 to vector<16x128xf32>
    %18 = arith.addf %17, %16 : vector<16x128xf32>
    %19 = tpu.reciprocal %18 {approx = true} : vector<16x128xf32> -> vector<16x128xf32>
    %cst_10 = arith.constant 1.06140542 : f32
    %20 = vector.broadcast %cst_10 : f32 to vector<16x128xf32>
    %21 = arith.mulf %20, %19 : vector<16x128xf32>
    %cst_11 = arith.constant -1.45315206 : f32
    %22 = vector.broadcast %cst_11 : f32 to vector<16x128xf32>
    %23 = arith.addf %21, %22 : vector<16x128xf32>
    %24 = arith.mulf %23, %19 : vector<16x128xf32>
    %cst_12 = arith.constant 1.42141378 : f32
    %25 = vector.broadcast %cst_12 : f32 to vector<16x128xf32>
    %26 = arith.addf %24, %25 : vector<16x128xf32>
    %27 = arith.mulf %26, %19 : vector<16x128xf32>
    %cst_13 = arith.constant -0.284496725 : f32
    %28 = vector.broadcast %cst_13 : f32 to vector<16x128xf32>
    %29 = arith.addf %27, %28 : vector<16x128xf32>
    %30 = arith.mulf %29, %19 : vector<16x128xf32>
    %cst_14 = arith.constant 0.254829586 : f32
    %31 = vector.broadcast %cst_14 : f32 to vector<16x128xf32>
    %32 = arith.addf %30, %31 : vector<16x128xf32>
    %33 = arith.mulf %32, %19 : vector<16x128xf32>
    %cst_15 = arith.constant 0.000000e+00 : f32
    %34 = vector.broadcast %cst_15 : f32 to vector<16x128xf32>
    %35 = arith.subf %34, %14 : vector<16x128xf32>
    %36 = arith.mulf %35, %14 : vector<16x128xf32>
    %37 = math.exp %36 : vector<16x128xf32>
    %38 = arith.mulf %33, %37 : vector<16x128xf32>
    %cst_16 = arith.constant 1.000000e+00 : f32
    %39 = vector.broadcast %cst_16 : f32 to vector<16x128xf32>
    %40 = arith.subf %39, %38 : vector<16x128xf32>
    %cst_17 = arith.constant 0.000000e+00 : f32
    %41 = vector.broadcast %cst_17 : f32 to vector<16x128xf32>
    %42 = arith.cmpf olt, %13, %41 : vector<16x128xf32>
    %cst_18 = arith.constant 0.000000e+00 : f32
    %43 = vector.broadcast %cst_18 : f32 to vector<16x128xf32>
    %44 = arith.subf %43, %40 : vector<16x128xf32>
    %45 = arith.select %42, %44, %40 : vector<16x128xi1>, vector<16x128xf32>
    %cst_19 = arith.constant 1.000000e+00 : f32
    %46 = vector.broadcast %cst_19 : f32 to vector<16x128xf32>
    %47 = arith.addf %46, %45 : vector<16x128xf32>
    %48 = arith.mulf %11, %47 : vector<16x128xf32>
    %c0_20 = arith.constant 0 : index
    %c0_21 = arith.constant 0 : index
    %49 = vector.load %arg8[%c0_20, %c0_21] : memref<16x128xf32, #tpu.memory_space<vmem>>, vector<16x128xf32>
    %50 = arith.truncf %48 : vector<16x128xf32> to vector<16x128xbf16>
    %c0_22 = arith.constant 0 : index
    %c0_23 = arith.constant 0 : index
    %51 = vector.load %arg5[%c0_22, %c0_23] : memref<128x128xbf16, #tpu.memory_space<vmem>>, vector<128x128xbf16>
    %cst_24 = arith.constant dense<0.000000e+00> : vector<16x128xf32>
    %52 = tpu.matmul %50, %51, %cst_24 {dimension_numbers = #tpu.dot_dimension_numbers<[1], [0], [0], [1], [0, 0, 1, 1], [], []>} : vector<16x128xbf16>, vector<128x128xbf16>, vector<16x128xf32> -> vector<16x128xf32>
    %53 = arith.addf %49, %52 : vector<16x128xf32>
    %c0_25 = arith.constant 0 : index
    %c0_26 = arith.constant 0 : index
    %54 = vector.load %arg8[%c0_25, %c0_26] : memref<16x128xf32, #tpu.memory_space<vmem>>, vector<16x128xf32>
    tpu.vector_store %arg8[%c0_25, %c0_26], %53 {strides = array<i32>} : memref<16x128xf32, #tpu.memory_space<vmem>>, vector<16x128xf32>,
    %c0_i32_27 = arith.constant 0 : i32
    %55 = arith.cmpi eq, %arg1, %c0_i32_27 : i32
    %56 = arith.extui %55 : i1 to i32
    %c0_i32_28 = arith.constant 0 : i32
    %57 = arith.cmpi ne, %56, %c0_i32_28 : i32
    scf.if %57 {
      %c0_29 = arith.constant 0 : index
      %c0_30 = arith.constant 0 : index
      %58 = vector.load %arg8[%c0_29, %c0_30] : memref<16x128xf32, #tpu.memory_space<vmem>>, vector<16x128xf32>
      %c0_31 = arith.constant 0 : index
      %c0_32 = arith.constant 0 : index
      %59 = vector.load %arg6[%c0_31, %c0_32] : memref<1x128xf32, #tpu.memory_space<vmem>>, vector<1x128xf32>
      %60 = vector.broadcast %59 : vector<1x128xf32> to vector<16x128xf32>
      %61 = arith.addf %58, %60 : vector<16x128xf32>
      %c0_33 = arith.constant 0 : index
      %c0_34 = arith.constant 0 : index
      %62 = vector.load %arg7[%c0_33, %c0_34] : memref<16x128xf32, #tpu.memory_space<vmem>>, vector<16x128xf32>
      tpu.vector_store %arg7[%c0_33, %c0_34], %61 {strides = array<i32>} : memref<16x128xf32, #tpu.memory_space<vmem>>, vector<16x128xf32>,
    } else {
    }
    return
  }
  func.func @transform_0(%arg0: i32, %arg1: i32) -> (i32, i32) {
    %c0_i32 = arith.constant 0 : i32
    %c0_i32_0 = arith.constant 0 : i32
    return %arg0, %c0_i32 : i32, i32
  }
  func.func @transform_1(%arg0: i32, %arg1: i32) -> (i32, i32) {
    %c0_i32 = arith.constant 0 : i32
    %c0_i32_0 = arith.constant 0 : i32
    return %c0_i32, %arg1 : i32, i32
  }
  func.func @transform_2(%arg0: i32, %arg1: i32) -> (i32, i32) {
    %c0_i32 = arith.constant 0 : i32
    %c0_i32_0 = arith.constant 0 : i32
    return %c0_i32, %arg1 : i32, i32
  }
  func.func @transform_3(%arg0: i32, %arg1: i32) -> (i32, i32) {
    %c0_i32 = arith.constant 0 : i32
    %c0_i32_0 = arith.constant 0 : i32
    return %arg1, %c0_i32 : i32, i32
  }
  func.func @transform_4(%arg0: i32, %arg1: i32) -> (i32, i32) {
    %c0_i32 = arith.constant 0 : i32
    %c0_i32_0 = arith.constant 0 : i32
    %c0_i32_1 = arith.constant 0 : i32
    return %c0_i32, %c0_i32_0 : i32, i32
  }
  func.func @transform_5(%arg0: i32, %arg1: i32) -> (i32, i32) {
    %c0_i32 = arith.constant 0 : i32
    %c0_i32_0 = arith.constant 0 : i32
    return %arg0, %c0_i32 : i32, i32
  }
}

</mosaic_0001>

<llo_original>
// kernel: mlp_forward.1
$region0: #{mlp_forward.1}
  #allocation0 [shape = 'u32[]', space=smem, size = 0x4, offset = 0x4, fixed_abs, tag = 'smem constant byte address 0x4 - core index']
  #allocation1 [shape = 'u32[144,128]{1,0:T(1,128)}', space=vmem, size = 0x12000, scoped, tag = 'internal scratch']
  #allocation2 [shape = 'f32[16,128]{1,0:T(8,128)}', space=vmem, size = 0x2000, scoped, tag = 'scratch operand']
  %s0 = inlined_call_operand.vmem [shape: f32[16,128], index: 0, kind: input, shape index: {}]
  %s1 = inlined_call_operand.hbm [shape: bf16[128,128], index: 1, kind: input, shape index: {}]
  %s2 = inlined_call_operand.vmem [shape: f32[1,128], index: 2, kind: input, shape index: {}]
  %s3 = inlined_call_operand.hbm [shape: bf16[128,128], index: 3, kind: input, shape index: {}]
  %s4 = inlined_call_operand.vmem [shape: f32[1,128], index: 4, kind: input, shape index: {}]
  %s5 = inlined_call_operand.vmem [shape: f32[16,128], index: 5, kind: output, shape index: {}]
  %s6 = sld [smem:[#allocation0]]
  $region46: #{mlp_forward.1} parent=0
    _
  %s8 = ssub.s32 1, %s6
  %s9 = scalar_select 0, %s8, %s6
  $region1: #{mlp_forward.1} parent=0
    #allocation3 [shape = 'u8[32768]{0}', space=vmem, size = 0x8000, scoped, tag = 'input window, operand 1, single buffered']
    #allocation4 [shape = 's32[1]{0}', space=sflag, size = 0x4, scoped, tag = 'scoped memory for mlp_forward.1']
    #allocation5 [shape = 'u8[32768]{0}', space=vmem, size = 0x8000, scoped, tag = 'input window, operand 3, single buffered']
    #allocation6 [shape = 's32[1]{0}', space=sflag, size = 0x4, scoped, tag = 'scoped memory for mlp_forward.1']
    %10 = vsyncpa [#allocation4], 0
    %11 = vsyncpa [#allocation6], 0
    // Predicated region
    $region2: #{mlp_forward.1} parent=1 // pred_check
      _
    $region3: #{mlp_forward.1} parent=1 // pred_check_branch
      %13 = sbr.rel (0) target = $region5
    $region4: #{mlp_forward.1} parent=1 // pred_region
      _
    $region5: #{mlp_forward.1} parent=1 // pred_fallthru
      _
    // Predicated region
    $region6: #{mlp_forward.1} parent=1 // pred_check
      _
    $region7: #{mlp_forward.1} parent=1 // pred_check_branch
      %15 = sbr.rel (0) target = $region9
    $region8: #{mlp_forward.1} parent=1 // pred_region
      %s17 = ssub.s32 1024, 1024
      %18 = vsyncadd [#allocation4], %s17
      %s19 = sshll.u32 [#allocation3], 4
      %s20 = int_to_ptr.vmem [resolvable:$true] %s19
      %25 = dma.hbm_to_vmem [thread:$0]  %s1, 1024, %s20, [#allocation4], 64, 64, 4
    $region9: #{mlp_forward.1} parent=1 // pred_fallthru
      _
    // Predicated region
    $region10: #{mlp_forward.1} parent=1 // pred_check
      _
    $region11: #{mlp_forward.1} parent=1 // pred_check_branch
      %27 = sbr.rel (0) target = $region13
    $region12: #{mlp_forward.1} parent=1 // pred_region
      _
    $region13: #{mlp_forward.1} parent=1 // pred_fallthru
      _
    // Predicated region
    $region14: #{mlp_forward.1} parent=1 // pred_check
      _
    $region15: #{mlp_forward.1} parent=1 // pred_check_branch
      %29 = sbr.rel (0) target = $region17
    $region16: #{mlp_forward.1} parent=1 // pred_region
      %s31 = ssub.s32 1024, 1024
      %32 = vsyncadd [#allocation6], %s31
      %s33 = sshll.u32 [#allocation5], 4
      %s34 = int_to_ptr.vmem [resolvable:$true] %s33
      %39 = dma.hbm_to_vmem [thread:$0]  %s3, 1024, %s34, [#allocation6], 64, 64, 4
    $region17: #{mlp_forward.1} parent=1 // pred_fallthru
      _
    // Predicated region
    $region18: #{mlp_forward.1} parent=1 // pred_check
      _
    $region19: #{mlp_forward.1} parent=1 // pred_check_branch
      %41 = sbr.rel (0) target = $region21
    $region20: #{mlp_forward.1} parent=1 // pred_region
      _
    $region21: #{mlp_forward.1} parent=1 // pred_fallthru
      _
    // Predicated region
    $region22: #{mlp_forward.1} parent=1 // pred_check
      _
    $region23: #{mlp_forward.1} parent=1 // pred_check_branch
      %43 = sbr.rel (0) target = $region25
    $region24: #{mlp_forward.1} parent=1 // pred_region
      %44 = dma.done [#allocation4], 1024
    $region25: #{mlp_forward.1} parent=1 // pred_fallthru
      _
    // Predicated region
    $region26: #{mlp_forward.1} parent=1 // pred_check
      _
    $region27: #{mlp_forward.1} parent=1 // pred_check_branch
      %46 = sbr.rel (0) target = $region29
    $region28: #{mlp_forward.1} parent=1 // pred_region
      %47 = dma.done [#allocation6], 1024
    $region29: #{mlp_forward.1} parent=1 // pred_fallthru
      _
    %p49 = scmp.eq.s32.totalorder 0, 0
    // Predicated region
    $region30: #{mlp_forward.1} parent=1 // pred_check
      %p50 = pneg %p49
    $region31: #{mlp_forward.1} parent=1 // pred_check_branch
      %52 = sbr.rel (%p50) target = $region33
    $region32: #{mlp_forward.1} parent=1 // pred_region
      %53 = vst [vmem:[#allocation2] sm:$0xff] 0.0
      %54 = vst [vmem:[#allocation2 + $0x8] sm:$0xff] 0.0
    $region33: #{mlp_forward.1} parent=1 // pred_fallthru
      _
    %v55 = vld [vmem:[%s0] sm:$0xff]
    %v56 = vld [vmem:[%s0 + $0x8] sm:$0xff]
    %v57 = vpack.c.bf16 %v56, %v55
    %v58 = vld [vmem:[#allocation3] sm:$0xf]
    %v59 = vld [vmem:[#allocation3 + $0x4] sm:$0xf]
    %v60 = vld [vmem:[#allocation3 + $0x8] sm:$0xf]
    %v61 = vld [vmem:[#allocation3 + $0xc] sm:$0xf]
    %v62 = vld [vmem:[#allocation3 + $0x10] sm:$0xf]
    %v63 = vld [vmem:[#allocation3 + $0x14] sm:$0xf]
    %v64 = vld [vmem:[#allocation3 + $0x18] sm:$0xf]
    %v65 = vld [vmem:[#allocation3 + $0x1c] sm:$0xf]
    %v66 = vld [vmem:[#allocation3 + $0x20] sm:$0xf]
    %v67 = vld [vmem:[#allocation3 + $0x24] sm:$0xf]
    %v68 = vld [vmem:[#allocation3 + $0x28] sm:$0xf]
    %v69 = vld [vmem:[#allocation3 + $0x2c] sm:$0xf]
    %v70 = vld [vmem:[#allocation3 + $0x30] sm:$0xf]
    %v71 = vld [vmem:[#allocation3 + $0x34] sm:$0xf]
    %v72 = vld [vmem:[#allocation3 + $0x38] sm:$0xf]
    %v73 = vld [vmem:[#allocation3 + $0x3c] sm:$0xf]
    %v74 = vld [vmem:[%s2] sm:$0x1]
    %v76 = vlaneseq
    %v77 = vshrl.u32 %v76, 7
    %v78 = vsub.s32 0, %v77
    %v79 = vrot.slane %v74, %v78
    %v97 = vunpack.c.l.b16 %v58
    %v98 = vunpack.c.l.b16 %v59
    %v99 = vunpack.c.l.b16 %v60
    %v100 = vunpack.c.l.b16 %v61
    %v101 = vunpack.c.l.b16 %v62
    %v102 = vunpack.c.l.b16 %v63
    %v103 = vunpack.c.l.b16 %v64
    %v104 = vunpack.c.l.b16 %v65
    %v105 = vunpack.c.l.b16 %v66
    %v106 = vunpack.c.l.b16 %v67
    %v107 = vunpack.c.l.b16 %v68
    %v108 = vunpack.c.l.b16 %v69
    %v109 = vunpack.c.l.b16 %v70
    %v110 = vunpack.c.l.b16 %v71
    %v111 = vunpack.c.l.b16 %v72
    %v112 = vunpack.c.l.b16 %v73
    %v113 = vpack.c.b16 %v98, %v97
    %v114 = vpack.c.b16 %v100, %v99
    %v115 = vpack.c.b16 %v102, %v101
    %v116 = vpack.c.b16 %v104, %v103
    %v117 = vpack.c.b16 %v106, %v105
    %v118 = vpack.c.b16 %v108, %v107
    %v119 = vpack.c.b16 %v110, %v109
    %v120 = vpack.c.b16 %v112, %v111
    %129 = vmatprep.subr.bf16.mxu0 0
    %130 = vmatpush1.bf16.msra.mxu0 %v113
    %131 = vmatprep.subr.bf16.mxu0 0
    %132 = vmatpush1.bf16.msra.mxu0 %v114
    %133 = vmatprep.subr.bf16.mxu0 0
    %134 = vmatpush1.bf16.msra.mxu0 %v115
    %135 = vmatprep.subr.bf16.mxu0 0
    %136 = vmatpush1.bf16.msra.mxu0 %v116
    %137 = vmatprep.subr.bf16.mxu0 0
    %138 = vmatpush1.bf16.msra.mxu0 %v117
    %139 = vmatprep.subr.bf16.mxu0 0
    %140 = vmatpush1.bf16.msra.mxu0 %v118
    %141 = vmatprep.subr.bf16.mxu0 0
    %142 = vmatpush1.bf16.msra.mxu0 %v119
    %143 = vmatprep.subr.bf16.mxu0 0
    %144 = vmatpush1.bf16.msra.mxu0 %v120
    %145 = vmatprep.subr.bf16.mxu0 0
    %146 = vmatpush1.bf16.msra.mxu0 0
    %147 = vmatprep.subr.bf16.mxu0 0
    %148 = vmatpush1.bf16.msra.mxu0 0
    %149 = vmatprep.subr.bf16.mxu0 0
    %150 = vmatpush1.bf16.msra.mxu0 0
    %151 = vmatprep.subr.bf16.mxu0 0
    %152 = vmatpush1.bf16.msra.mxu0 0
    %153 = vmatprep.subr.bf16.mxu0 0
    %154 = vmatpush1.bf16.msra.mxu0 0
    %155 = vmatprep.subr.bf16.mxu0 0
    %156 = vmatpush1.bf16.msra.mxu0 0
    %157 = vmatprep.subr.bf16.mxu0 0
    %158 = vmatpush1.bf16.msra.mxu0 0
    %159 = vmatprep.subr.bf16.mxu0 0
    %160 = vmatpush1.bf16.msra.mxu0 0
    %161 = vmatprep.mubr.bf16.mxu0 0
    %162 = vmatmul.mubr.bf16.gmra.mrb[0].mxu0 %v57
    %v163 = vpop.f32.mrb[0].mxu0
    %v164 = vadd.f32 %v79, %v163
    %v165 = vpop.f32.mrb[0].mxu0
    %v166 = vpop.f32.mrb[0].mxu0
    %v167 = vadd.f32 %v79, %v166
    %v168 = vpop.f32.mrb[0].mxu0
    %169 = vdwg.mxu0
    %v170 = vmul.f32 %v164, 0.5
    %v171 = vmul.f32 %v167, 0.5
    %v172 = vmul.f32 %v164, 0.70710677
    %v173 = vmul.f32 %v167, 0.70710677
    %v174 = vand.u32 2147483647, %v172
    %v175 = vand.u32 2147483647, %v173
    %v176 = vmul.f32 %v174, 0.3275911
    %v177 = vmul.f32 %v175, 0.3275911
    %v178 = vadd.f32 %v176, 1.0
    %v179 = vadd.f32 %v177, 1.0
    %v180 = vrcp.pop %v178
    %v181 = vrcp.pop %v179
    %v182 = vmul.f32 %v180, 1.0614054
    %v183 = vmul.f32 %v181, 1.0614054
    %v184 = vadd.f32 %v182, -1.4531521
    %v185 = vadd.f32 %v183, -1.4531521
    %v186 = vmul.f32 %v184, %v180
    %v187 = vmul.f32 %v185, %v181
    %v188 = vadd.f32 %v186, 1.4214138
    %v189 = vadd.f32 %v187, 1.4214138
    %v190 = vmul.f32 %v188, %v180
    %v191 = vmul.f32 %v189, %v181
    %v192 = vadd.f32 %v190, -0.28449672
    %v193 = vadd.f32 %v191, -0.28449672
    %v194 = vmul.f32 %v192, %v180
    %v195 = vmul.f32 %v193, %v181
    %v196 = vadd.f32 %v194, 0.2548296
    %v197 = vadd.f32 %v195, 0.2548296
    %v198 = vmul.f32 %v196, %v180
    %v199 = vmul.f32 %v197, %v181
    %v200 = vsub.f32 0.0, %v174
    %v201 = vsub.f32 0.0, %v175
    %v202 = vmul.f32 %v200, %v174
    %v203 = vmul.f32 %v201, %v175
    %v204 = vmul.f32 %v202, 1.442695
    %v205 = vpow.pop %v204
    %v206 = vmul.f32 %v203, 1.442695
    %v207 = vpow.pop %v206
    %v208 = vmul.f32 %v198, %v205
    %v209 = vmul.f32 %v199, %v207
    %v210 = vsub.f32 1.0, %v208
    %v211 = vsub.f32 1.0, %v209
    %vm212 = vcmp.lt.f32.partialorder %v172, 0.0
    %vm213 = vcmp.lt.f32.partialorder %v173, 0.0
    %v214 = vsub.f32 0.0, %v210
    %v215 = vsub.f32 0.0, %v211
    %v216 = vsel %vm212, %v214, %v210
    %v217 = vsel %vm213, %v215, %v211
    %v218 = vadd.f32 %v216, 1.0
    %v219 = vadd.f32 %v217, 1.0
    %v220 = vmul.f32 %v170, %v218
    %v221 = vmul.f32 %v171, %v219
    %v222 = vld [vmem:[#allocation2] sm:$0xff]
    %v223 = vld [vmem:[#allocation2 + $0x8] sm:$0xff]
    %v224 = vpack.c.bf16 %v221, %v220
    %v225 = vld [vmem:[#allocation5] sm:$0xf]
    %v226 = vld [vmem:[#allocation5 + $0x4] sm:$0xf]
    %v227 = vld [vmem:[#allocation5 + $0x8] sm:$0xf]
    %v228 = vld [vmem:[#allocation5 + $0xc] sm:$0xf]
    %v229 = vld [vmem:[#allocation5 + $0x10] sm:$0xf]
    %v230 = vld [vmem:[#allocation5 + $0x14] sm:$0xf]
    %v231 = vld [vmem:[#allocation5 + $0x18] sm:$0xf]
    %v232 = vld [vmem:[#allocation5 + $0x1c] sm:$0xf]
    %v233 = vld [vmem:[#allocation5 + $0x20] sm:$0xf]
    %v234 = vld [vmem:[#allocation5 + $0x24] sm:$0xf]
    %v235 = vld [vmem:[#allocation5 + $0x28] sm:$0xf]
    %v236 = vld [vmem:[#allocation5 + $0x2c] sm:$0xf]
    %v237 = vld [vmem:[#allocation5 + $0x30] sm:$0xf]
    %v238 = vld [vmem:[#allocation5 + $0x34] sm:$0xf]
    %v239 = vld [vmem:[#allocation5 + $0x38] sm:$0xf]
    %v240 = vld [vmem:[#allocation5 + $0x3c] sm:$0xf]
    %v257 = vunpack.c.l.b16 %v225
    %v258 = vunpack.c.l.b16 %v226
    %v259 = vunpack.c.l.b16 %v227
    %v260 = vunpack.c.l.b16 %v228
    %v261 = vunpack.c.l.b16 %v229
    %v262 = vunpack.c.l.b16 %v230
    %v263 = vunpack.c.l.b16 %v231
    %v264 = vunpack.c.l.b16 %v232
    %v265 = vunpack.c.l.b16 %v233
    %v266 = vunpack.c.l.b16 %v234
    %v267 = vunpack.c.l.b16 %v235
    %v268 = vunpack.c.l.b16 %v236
    %v269 = vunpack.c.l.b16 %v237
    %v270 = vunpack.c.l.b16 %v238
    %v271 = vunpack.c.l.b16 %v239
    %v272 = vunpack.c.l.b16 %v240
    %v273 = vpack.c.b16 %v258, %v257
    %v274 = vpack.c.b16 %v260, %v259
    %v275 = vpack.c.b16 %v262, %v261
    %v276 = vpack.c.b16 %v264, %v263
    %v277 = vpack.c.b16 %v266, %v265
    %v278 = vpack.c.b16 %v268, %v267
    %v279 = vpack.c.b16 %v270, %v269
    %v280 = vpack.c.b16 %v272, %v271
    %289 = vmatprep.subr.bf16.mxu0 0
    %290 = vmatpush1.bf16.msra.mxu0 %v273
    %291 = vmatprep.subr.bf16.mxu0 0
    %292 = vmatpush1.bf16.msra.mxu0 %v274
    %293 = vmatprep.subr.bf16.mxu0 0
    %294 = vmatpush1.bf16.msra.mxu0 %v275
    %295 = vmatprep.subr.bf16.mxu0 0
    %296 = vmatpush1.bf16.msra.mxu0 %v276
    %297 = vmatprep.subr.bf16.mxu0 0
    %298 = vmatpush1.bf16.msra.mxu0 %v277
    %299 = vmatprep.subr.bf16.mxu0 0
    %300 = vmatpush1.bf16.msra.mxu0 %v278
    %301 = vmatprep.subr.bf16.mxu0 0
    %302 = vmatpush1.bf16.msra.mxu0 %v279
    %303 = vmatprep.subr.bf16.mxu0 0
    %304 = vmatpush1.bf16.msra.mxu0 %v280
    %305 = vmatprep.subr.bf16.mxu0 0
    %306 = vmatpush1.bf16.msra.mxu0 0
    %307 = vmatprep.subr.bf16.mxu0 0
    %308 = vmatpush1.bf16.msra.mxu0 0
    %309 = vmatprep.subr.bf16.mxu0 0
    %310 = vmatpush1.bf16.msra.mxu0 0
    %311 = vmatprep.subr.bf16.mxu0 0
    %312 = vmatpush1.bf16.msra.mxu0 0
    %313 = vmatprep.subr.bf16.mxu0 0
    %314 = vmatpush1.bf16.msra.mxu0 0
    %315 = vmatprep.subr.bf16.mxu0 0
    %316 = vmatpush1.bf16.msra.mxu0 0
    %317 = vmatprep.subr.bf16.mxu0 0
    %318 = vmatpush1.bf16.msra.mxu0 0
    %319 = vmatprep.subr.bf16.mxu0 0
    %320 = vmatpush1.bf16.msra.mxu0 0
    %321 = vmatprep.mubr.bf16.mxu0 0
    %322 = vmatmul.mubr.bf16.gmra.mrb[0].mxu0 %v224
    %v323 = vpop.f32.mrb[0].mxu0
    %v324 = vadd.f32 0.0, %v323
    %v325 = vpop.f32.mrb[0].mxu0
    %v326 = vpop.f32.mrb[0].mxu0
    %v327 = vadd.f32 0.0, %v326
    %v328 = vpop.f32.mrb[0].mxu0
    %329 = vdwg.mxu0
    %v330 = vadd.f32 %v222, %v324
    %v331 = vadd.f32 %v223, %v327
    %332 = vst [vmem:[#allocation2] sm:$0xff] %v330
    %333 = vst [vmem:[#allocation2 + $0x8] sm:$0xff] %v331
    // Predicated region
    $region34: #{mlp_forward.1} parent=1 // pred_check
      %p334 = pneg %p49
    $region35: #{mlp_forward.1} parent=1 // pred_check_branch
      %336 = sbr.rel (%p334) target = $region37
    $region36: #{mlp_forward.1} parent=1 // pred_region
      %v337 = vld [vmem:[#allocation2] sm:$0xff]
      %v338 = vld [vmem:[#allocation2 + $0x8] sm:$0xff]
      %v339 = vld [vmem:[%s4] sm:$0x1]
      %v341 = vlaneseq
      %v342 = vshrl.u32 %v341, 7
      %v343 = vsub.s32 0, %v342
      %v344 = vrot.slane %v339, %v343
      %v346 = vadd.f32 %v337, %v344
      %v347 = vadd.f32 %v338, %v344
      %348 = vst [vmem:[%s5] sm:$0xff] %v346
      %349 = vst [vmem:[%s5 + $0x8] sm:$0xff] %v347
    $region37: #{mlp_forward.1} parent=1 // pred_fallthru
      _
    // Predicated region
    $region38: #{mlp_forward.1} parent=1 // pred_check
      _
    $region39: #{mlp_forward.1} parent=1 // pred_check_branch
      %351 = sbr.rel (0) target = $region41
    $region40: #{mlp_forward.1} parent=1 // pred_region
      _
    $region41: #{mlp_forward.1} parent=1 // pred_fallthru
      _
    // Predicated region
    $region42: #{mlp_forward.1} parent=1 // pred_check
      _
    $region43: #{mlp_forward.1} parent=1 // pred_check_branch
      %353 = sbr.rel (0) target = $region45
    $region44: #{mlp_forward.1} parent=1 // pred_region
      _
    $region45: #{mlp_forward.1} parent=1 // pred_fallthru
      _
    %354 = vsyncpa [#allocation4], 1
    %355 = vsyncpa [#allocation6], 1

</llo_original>
